<compile_context>
chip_gen: v7x
topology: tpu7x:2x2x1
jax: 0.10.0
libtpu: 0.0.40
codegen_flags: <defaults>
</compile_context>

<pallas_src>
import functools

import jax
import jax.numpy as jnp
import numpy as np
from jax import lax
from jax.experimental import pallas as pl
from jax.experimental.pallas import tpu as pltpu


def _pick_tile(dim, preferred, quantum):
    """Largest divisor of `dim` that is <= preferred and a multiple of `quantum`.

    Falls back to the largest divisor <= preferred (any alignment), then to the full dim
    (a full-extent block is always legal for a BlockSpec).
    """
    best = None
    for t in range(min(preferred, dim), 0, -1):
        if dim % t:
            continue
        if t % quantum == 0:
            return t
        if best is None:
            best = t
    return best if best is not None else dim


def _make_kernel(th, cw, n_c, out_dtype):
    f32 = jnp.float32
    bf16 = jnp.bfloat16

    def kernel(alpha_ref, x_ref, p_ref, o_ref):
        a = alpha_ref[0]          # single shared PReLU / LeakyReLU slope (f32 scalar in SMEM)
        p = p_ref[...]            # (2cw, 2cw) one-hot column-scatter matrix, exact in bf16

        dot = functools.partial(jnp.dot, preferred_element_type=f32)

        def chunk(c):
            # Column chunk [c*cw, (c+1)*cw) of the input block -> output columns
            # [2*c*cw, 2*(c+1)*cw) of the output block.
            if isinstance(c, int):              # static path (n_c == 1)
                c0 = c * cw
                o0 = c * 2 * cw
            else:                               # dynamic path inside fori_loop
                c0 = pl.multiple_of(c * cw, cw)
                o0 = pl.multiple_of(c * (2 * cw), 2 * cw)
            cs = pl.ds(c0, cw)

            # even output rows <- planes 0 (even cols) and 1 (odd cols)
            # odd  output rows <- planes 2 (even cols) and 3 (odd cols)
            xe = jnp.concatenate([x_ref[0, 0, :, cs], x_ref[0, 1, :, cs]], axis=1)   # (th, 2cw)
            xo = jnp.concatenate([x_ref[0, 2, :, cs], x_ref[0, 3, :, cs]], axis=1)   # (th, 2cw)
            xc = jnp.concatenate([xe, xo], axis=0).astype(f32)                       # (2th, 2cw)

            # Exact 3-way bf16 split of the f32 operand: hi + mid + lo == xc exactly for normal
            # floats, and the one-hot RHS is exact in bf16, so 3 DEFAULT-precision bf16 passes
            # reproduce the f32 values bit-exactly (replaces the 6-pass precision=HIGHEST scatter).
            hi = xc.astype(bf16)
            r1 = xc - hi.astype(f32)
            mi = r1.astype(bf16)
            r2 = r1 - mi.astype(f32)
            lo = r2.astype(bf16)

            z = dot(hi, p) + dot(mi, p) + dot(lo, p)              # (2th, 2cw) f32, cols interleaved

            # Row (sublane) interleave on the XLU instead of matmuls:
            #   out row 2r   <- z[r]      (even-parity group)
            #   out row 2r+1 <- z[th + r] (odd-parity group)
            blk = jnp.stack([z[:th], z[th:]], axis=1).reshape(2 * th, 2 * cw)

            # PReLU / LeakyReLU / identity (identity when a == 1.0).
            blk = jnp.where(blk > 0, blk, a * blk)

            o_ref[0, :, pl.ds(o0, 2 * cw)] = blk.astype(out_dtype)

        if n_c == 1:
            chunk(0)
        else:
            def body(c, carry):
                chunk(c)
                return carry
            lax.fori_loop(0, n_c, body, 0)

    return kernel


def upsample_forward(x, prelu_a=0.25, activation="prelu"):
    """Forward of Upsample: PixelShuffle(2) followed by PReLU / LeakyReLU / nothing (fused)."""
    N, C, H, W = x.shape
    assert C % 4 == 0, "PixelShuffle(2) needs channels divisible by 4"
    CO = C // 4
    G = N * CO

    xg = x.reshape(G, 4, H, W)                        # order-preserving -> free

    if activation == "prelu":
        alpha_val = prelu_a                            # nn.PReLU() single shared parameter
    elif activation == "lrelu":
        alpha_val = 0.01                               # nn.LeakyReLU() default slope
    else:                                              # 'None' -> identity
        alpha_val = 1.0

    itemsize = jnp.dtype(x.dtype).itemsize
    sub_q = max(8, 32 // itemsize)                     # dtype-aware sublane quantum (8 f32, 16 bf16)
    tw = _pick_tile(W, preferred=512, quantum=128)     # lane tile (output last dim = 2*tw)
    pref_th = max(sub_q, (2 << 20) // max(1, 4 * tw * itemsize))   # ~2 MiB input block
    th = _pick_tile(H, preferred=pref_th, quantum=sub_q)
    cw = _pick_tile(tw, preferred=128, quantum=1)      # per-matmul column chunk (K = 2*cw <= 256)
    n_c = tw // cw

    # One-hot column-scatter matrix (exact in bf16):
    #   row k      -> output column 2k   (plane j=0)
    #   row cw + k -> output column 2k+1 (plane j=1)
    P = np.zeros((2 * cw, 2 * cw), np.float32)
    k = np.arange(cw)
    P[k, 2 * k] = 1.0
    P[cw + k, 2 * k + 1] = 1.0
    P = jnp.asarray(P, jnp.bfloat16)

    alpha = jnp.full((1,), alpha_val, jnp.float32)

    grid = (G, H // th, W // tw)
    blk_bytes = 4 * th * tw * itemsize                 # input block bytes == output block bytes
    # 2x double-buffered input + 2x output + constants + compute temporaries; capped so the
    # footprint is safe on v7x (64 MiB physical VMEM) while still using big blocks on v5e/v6e.
    vmem_limit = int(min(4 * blk_bytes + (16 << 20), 40 << 20))

    out_flat = pl.pallas_call(
        _make_kernel(th, cw, n_c, x.dtype),
        out_shape=jax.ShapeDtypeStruct((G, 2 * H, 2 * W), x.dtype),
        grid=grid,
        in_specs=[
            pl.BlockSpec(memory_space=pltpu.MemorySpace.SMEM),                    # alpha scalar
            pl.BlockSpec((1, 4, th, tw), lambda g, hi, wi: (g, 0, hi, wi)),       # x block
            pl.BlockSpec((2 * cw, 2 * cw), lambda g, hi, wi: (0, 0)),             # P (constant)
        ],
        out_specs=pl.BlockSpec((1, 2 * th, 2 * tw), lambda g, hi, wi: (g, hi, wi)),
        compiler_params=pltpu.CompilerParams(
            dimension_semantics=("parallel", "parallel", "parallel"),
            vmem_limit_bytes=vmem_limit),
    )(alpha, xg, P)

    return out_flat.reshape(N, CO, 2 * H, 2 * W)


def _pixel_shuffle_ref(x, r=2):
    n, c, h, w = x.shape
    co = c // (r * r)
    x = x.reshape(n, co, r, r, h, w)
    x = jnp.transpose(x, (0, 1, 4, 2, 5, 3))
    return x.reshape(n, co, h * r, w * r)


if __name__ == "__main__":
    key = jax.random.PRNGKey(0)
    prelu_a = 0.25                       # nn.PReLU() default weight

    # Primary small shape + a wider shape that exercises the 128-lane chunks and the fori_loop.
    for shape in [(2, 8, 16, 16), (1, 4, 16, 256)]:
        key, sub = jax.random.split(key)
        x = jax.random.normal(sub, shape, dtype=jnp.float32)

        out = jax.block_until_ready(upsample_forward(x, prelu_a))

        xs = _pixel_shuffle_ref(x)
        ref = jnp.where(xs > 0, xs, prelu_a * xs)

        assert out.shape == ref.shape, (out.shape, ref.shape)
        assert out.dtype == x.dtype
        assert jnp.allclose(out, ref, atol=1e-6, rtol=1e-6), \
            (shape, float(jnp.max(jnp.abs(out - ref))))

    print("KERNEL_OK")
</pallas_src>

<mosaic_0001>
module attributes {stable_mosaic.version = 11 : i64} {
  func.func @kernel(%arg0: i32, %arg1: i32, %arg2: i32, %arg3: memref<1xf32, #tpu.memory_space<smem>>, %arg4: memref<1x4x16x16xf32, #tpu.memory_space<vmem>>, %arg5: memref<32x32xbf16, #tpu.memory_space<vmem>>, %arg6: memref<1x32x32xf32, #tpu.memory_space<vmem>>) attributes {dimension_semantics = [#tpu.dimension_semantics<parallel>, #tpu.dimension_semantics<parallel>, #tpu.dimension_semantics<parallel>], iteration_bounds = array<i64: 4, 1, 1>, scalar_prefetch = 0 : i64, scratch_operands = 0 : i64, tpu.core_type = #tpu.core_type<tc>, window_params = [{transform_indices = @transform_0, window_bounds = array<i64: 1>}, {transform_indices = @transform_1, window_bounds = array<i64: 1, 4, 16, 16>}, {pipeline_mode = #tpu.pipeline_mode<synchronous>, transform_indices = @transform_2, window_bounds = array<i64: 32, 32>}, {transform_indices = @transform_3, window_bounds = array<i64: 1, 32, 32>}]} {
    %c0 = arith.constant 0 : index
    %0 = memref.load %arg3[%c0] : memref<1xf32, #tpu.memory_space<smem>>
    %c0_0 = arith.constant 0 : index
    %c0_1 = arith.constant 0 : index
    %1 = vector.load %arg5[%c0_0, %c0_1] : memref<32x32xbf16, #tpu.memory_space<vmem>>, vector<32x32xbf16>
    %c0_2 = arith.constant 0 : index
    %c0_3 = arith.constant 0 : index
    %c0_4 = arith.constant 0 : index
    %c0_5 = arith.constant 0 : index
    %2 = vector.load %arg4[%c0_2, %c0_3, %c0_4, %c0_5] : memref<1x4x16x16xf32, #tpu.memory_space<vmem>>, vector<1x1x16x16xf32>
    %3 = vector.shape_cast %2 : vector<1x1x16x16xf32> to vector<16x16xf32>
    %c0_6 = arith.constant 0 : index
    %c1 = arith.constant 1 : index
    %c0_7 = arith.constant 0 : index
    %c0_8 = arith.constant 0 : index
    %4 = vector.load %arg4[%c0_6, %c1, %c0_7, %c0_8] : memref<1x4x16x16xf32, #tpu.memory_space<vmem>>, vector<1x1x16x16xf32>
    %5 = vector.shape_cast %4 : vector<1x1x16x16xf32> to vector<16x16xf32>
    %6 = tpu.concatenate %3, %5 in 1 : vector<16x16xf32>, vector<16x16xf32> -> vector<16x32xf32>
    %c0_9 = arith.constant 0 : index
    %c2 = arith.constant 2 : index
    %c0_10 = arith.constant 0 : index
    %c0_11 = arith.constant 0 : index
    %7 = vector.load %arg4[%c0_9, %c2, %c0_10, %c0_11] : memref<1x4x16x16xf32, #tpu.memory_space<vmem>>, vector<1x1x16x16xf32>
    %8 = vector.shape_cast %7 : vector<1x1x16x16xf32> to vector<16x16xf32>
    %c0_12 = arith.constant 0 : index
    %c3 = arith.constant 3 : index
    %c0_13 = arith.constant 0 : index
    %c0_14 = arith.constant 0 : index
    %9 = vector.load %arg4[%c0_12, %c3, %c0_13, %c0_14] : memref<1x4x16x16xf32, #tpu.memory_space<vmem>>, vector<1x1x16x16xf32>
    %10 = vector.shape_cast %9 : vector<1x1x16x16xf32> to vector<16x16xf32>
    %11 = tpu.concatenate %8, %10 in 1 : vector<16x16xf32>, vector<16x16xf32> -> vector<16x32xf32>
    %12 = tpu.concatenate %6, %11 in 0 : vector<16x32xf32>, vector<16x32xf32> -> vector<32x32xf32>
    %13 = arith.truncf %12 : vector<32x32xf32> to vector<32x32xbf16>
    %14 = arith.extf %13 : vector<32x32xbf16> to vector<32x32xf32>
    %15 = arith.subf %12, %14 : vector<32x32xf32>
    %16 = arith.truncf %15 : vector<32x32xf32> to vector<32x32xbf16>
    %17 = arith.extf %16 : vector<32x32xbf16> to vector<32x32xf32>
    %18 = arith.subf %15, %17 : vector<32x32xf32>
    %19 = arith.truncf %18 : vector<32x32xf32> to vector<32x32xbf16>
    %cst = arith.constant dense<0.000000e+00> : vector<32x32xf32>
    %20 = tpu.matmul %13, %1, %cst {dimension_numbers = #tpu.dot_dimension_numbers<[1], [0], [0], [1], [0, 0, 1, 1], [], []>} : vector<32x32xbf16>, vector<32x32xbf16>, vector<32x32xf32> -> vector<32x32xf32>
    %cst_15 = arith.constant dense<0.000000e+00> : vector<32x32xf32>
    %21 = tpu.matmul %16, %1, %cst_15 {dimension_numbers = #tpu.dot_dimension_numbers<[1], [0], [0], [1], [0, 0, 1, 1], [], []>} : vector<32x32xbf16>, vector<32x32xbf16>, vector<32x32xf32> -> vector<32x32xf32>
    %22 = arith.addf %20, %21 : vector<32x32xf32>
    %cst_16 = arith.constant dense<0.000000e+00> : vector<32x32xf32>
    %23 = tpu.matmul %19, %1, %cst_16 {dimension_numbers = #tpu.dot_dimension_numbers<[1], [0], [0], [1], [0, 0, 1, 1], [], []>} : vector<32x32xbf16>, vector<32x32xbf16>, vector<32x32xf32> -> vector<32x32xf32>
    %24 = arith.addf %22, %23 : vector<32x32xf32>
    %25 = vector.extract_strided_slice %24 {offsets = [0, 0], sizes = [16, 32], strides = [1, 1]} : vector<32x32xf32> to vector<16x32xf32>
    %26 = vector.extract_strided_slice %24 {offsets = [16, 0], sizes = [16, 32], strides = [1, 1]} : vector<32x32xf32> to vector<16x32xf32>
    %27 = vector.shape_cast %25 : vector<16x32xf32> to vector<16x1x32xf32>
    %28 = vector.shape_cast %26 : vector<16x32xf32> to vector<16x1x32xf32>
    %29 = tpu.concatenate %27, %28 in 1 : vector<16x1x32xf32>, vector<16x1x32xf32> -> vector<16x2x32xf32>
    %30 = vector.shape_cast %29 : vector<16x2x32xf32> to vector<32x32xf32>
    %cst_17 = arith.constant 0.000000e+00 : f32
    %31 = vector.broadcast %cst_17 : f32 to vector<32x32xf32>
    %32 = arith.cmpf ogt, %30, %31 : vector<32x32xf32>
    %33 = vector.broadcast %0 : f32 to vector<32x32xf32>
    %34 = arith.mulf %33, %30 : vector<32x32xf32>
    %35 = arith.select %32, %30, %34 : vector<32x32xi1>, vector<32x32xf32>
    %c0_18 = arith.constant 0 : index
    %c0_19 = arith.constant 0 : index
    %c0_20 = arith.constant 0 : index
    %36 = vector.load %arg6[%c0_18, %c0_19, %c0_20] : memref<1x32x32xf32, #tpu.memory_space<vmem>>, vector<1x32x32xf32>
    %37 = vector.shape_cast %36 : vector<1x32x32xf32> to vector<32x32xf32>
    %38 = vector.shape_cast %35 : vector<32x32xf32> to vector<1x32x32xf32>
    tpu.vector_store %arg6[%c0_18, %c0_19, %c0_20], %38 {strides = array<i32>} : memref<1x32x32xf32, #tpu.memory_space<vmem>>, vector<1x32x32xf32>,
    return
  }
  func.func @transform_0(%arg0: i32, %arg1: i32, %arg2: i32) -> i32 {
    %c0_i32 = arith.constant 0 : i32
    %c0_i32_0 = arith.constant 0 : i32
    return %c0_i32 : i32
  }
  func.func @transform_1(%arg0: i32, %arg1: i32, %arg2: i32) -> (i32, i32, i32, i32) {
    %c0_i32 = arith.constant 0 : i32
    %c0_i32_0 = arith.constant 0 : i32
    return %arg0, %c0_i32, %arg1, %arg2 : i32, i32, i32, i32
  }
  func.func @transform_2(%arg0: i32, %arg1: i32, %arg2: i32) -> (i32, i32) {
    %c0_i32 = arith.constant 0 : i32
    %c0_i32_0 = arith.constant 0 : i32
    %c0_i32_1 = arith.constant 0 : i32
    return %c0_i32, %c0_i32_0 : i32, i32
  }
  func.func @transform_3(%arg0: i32, %arg1: i32, %arg2: i32) -> (i32, i32, i32) {
    %c0_i32 = arith.constant 0 : i32
    return %arg0, %arg1, %arg2 : i32, i32, i32
  }
}

</mosaic_0001>

<llo_original>
// kernel: tpu_custom_call.1
$region0: #{tpu_custom_call.1}
  #allocation0 [shape = 'u32[]', space=smem, size = 0x4, offset = 0x4, fixed_abs, tag = 'smem constant byte address 0x4 - core index']
  #allocation1 [shape = 'u32[144,128]{1,0:T(1,128)}', space=vmem, size = 0x12000, scoped, tag = 'internal scratch']
  #allocation2 [shape = 'f32[1]{0:T(128)S(6)}', space=smem, size = 0x200, scoped, tag = 'scoped memory for tpu_custom_call.1']
  %s0 = inlined_call_operand.<no memory space> [shape: f32[1], index: 0, kind: input, shape index: {}]
  %s1 = inlined_call_operand.hbm [shape: f32[4,4,16,16], index: 1, kind: input, shape index: {}]
  %s2 = inlined_call_operand.hbm [shape: bf16[32,32], index: 2, kind: input, shape index: {}]
  %s3 = inlined_call_operand.hbm [shape: f32[4,32,32], index: 3, kind: output, shape index: {}]
  %s4 = sld [smem:[#allocation0]]
  $region53: #{tpu_custom_call.1} parent=0
    _
  %s6 = ssub.s32 1, %s4
  %s7 = scalar_select 0, %s6, %s4
  %8 = sst [smem:[#allocation2]] %s0
  $region1: #{tpu_custom_call.1} parent=0
    #allocation3 [shape = 'u8[65536]{0}', space=vmem, size = 0x10000, scoped, tag = 'input window, operand 1']
    #allocation4 [shape = 's32[2]{0}', space=sflag, size = 0x8, scoped, tag = 'scoped memory for tpu_custom_call.1']
    #allocation5 [shape = 's32[2]{0}', space=sflag, size = 0x8, scoped, tag = 'scoped memory for tpu_custom_call.1']
    #allocation6 [shape = 'u8[8192]{0}', space=vmem, size = 0x2000, scoped, tag = 'input window, operand 2, single buffered']
    #allocation7 [shape = 's32[1]{0}', space=sflag, size = 0x4, scoped, tag = 'scoped memory for tpu_custom_call.1']
    #allocation8 [shape = 'u8[32768]{0}', space=vmem, size = 0x8000, scoped, tag = 'output window, operand 0']
    %9 = vsyncpa [#allocation4], 0
    %s10 = scalar_lea.sflag [#allocation4], 1
    %11 = vsyncpa %s10, 0
    %12 = vsyncpa [#allocation7], 0
    %13 = vsyncpa [#allocation5], 0
    %s14 = scalar_lea.sflag [#allocation5], 1
    %15 = vsyncpa %s14, 0
    loop: start=0, step=1, limit=6
    $region2: #{tpu_custom_call.1} parent=1 // loop_pre_header
      _
    $region3: #{tpu_custom_call.1} parent=1 // loop_header
      %s17 = sphi 0, %s21
      %p18 = scmp.ge.s32.totalorder %s17, 6
      %s24 = sphi 0, %s43
      %s25 = sphi 0, %s39
      %s26 = sphi 0, %s35
      %s27 = sphi 0, %s24
      %s28 = sphi 0, %s25
      %s29 = sphi 0, %s26
      %s30 = sphi 0, %s27
      %s31 = sphi 0, %s28
      %s32 = sphi 0, %s29
      %s44 = sphi 0, %s44
      %s46 = sphi 0, %s44
      %s47 = sphi 0, %s46
      %s61 = sphi 0, %s47
      %s71 = sphi 0, %s73
      %s74 = sphi 0, %s71
      %s75 = sphi 0, %s74
      %s91 = sphi 0, %s75
      %s95 = sphi 0, %s95
      %s97 = sphi 0, %s95
      %s98 = sphi 0, %s97
      %s112 = sphi 0, %s98
      %s122 = sphi 0, %s124
      %s125 = sphi 0, %s122
      %s126 = sphi 0, %s125
      %s142 = sphi 0, %s126
    $region4: #{tpu_custom_call.1} parent=1 // loop_header_branch
      %20 = sbr.rel (%p18) target = $region8
    $region5: #{tpu_custom_call.1} parent=1 // loop_body
      %s22 = ssub.s32 %s17, 1
      %s23 = ssub.s32 %s17, 2
      %s33 = sadd.s32 1, %s26
      %p34 = scmp.ge.s32.totalorder %s33, 1
      %s35 = scalar_select %p34, 0, %s33
      %s36 = sadd.s32 1, %s25
      %s37 = scalar_select %p34, %s36, %s25
      %p38 = scmp.ge.s32.totalorder %s37, 1
      %s39 = scalar_select %p38, 0, %s37
      %s40 = sadd.s32 1, %s24
      %s41 = scalar_select %p38, %s40, %s24
      %p42 = scmp.ge.s32.totalorder %s41, 4
      %s43 = scalar_select %p42, 0, %s41
      %s45 = sadd.s32 %s44, 1
      %p48 = scmp.eq.s32.totalorder %s17, 3
      %p49 = scmp.ne.s32.totalorder %s44, %s46
      %p50 = scmp.eq.s32.totalorder %s17, 0
      %p51 = por %p49, %p50
      %p52 = scmp.ne.s32.totalorder %s44, %s46
      %p53 = scmp.eq.s32.totalorder %s22, 3
      %p54 = por %p52, %p53
      %p55 = scmp.ne.s32.totalorder %s46, %s47
      %p56 = scmp.eq.s32.totalorder %s22, 0
      %p57 = por %p55, %p56
      %p58 = scmp.ne.s32.totalorder %s46, %s47
      %p59 = scmp.eq.s32.totalorder %s23, 3
      %p60 = por %p58, %p59
      %p62 = scmp.ne.s32.totalorder %s47, %s61
      %p63 = scmp.eq.s32.totalorder %s23, 0
      %p64 = por %p62, %p63
      %s65 = ssub.s32 %s24, %s43
      %s66 = ssub.s32 %s25, %s39
      %s67 = sor.u32 %s65, %s66
      %s68 = ssub.s32 %s26, %s35
      %s69 = sor.u32 %s67, %s68
      %p70 = scmp.eq.s32.totalorder %s69, 0
      %s72 = sadd.s32 %s71, 1
      %s73 = scalar_select %p70, %s71, %s72
      %p76 = pneg %p70
      %p77 = scmp.eq.s32.totalorder %s17, 3
      %p78 = por %p76, %p77
      %p79 = scmp.ne.s32.totalorder %s71, %s74
      %p80 = scmp.eq.s32.totalorder %s17, 0
      %p81 = por %p79, %p80
      %p82 = scmp.ne.s32.totalorder %s71, %s74
      %p83 = scmp.eq.s32.totalorder %s22, 3
      %p84 = por %p82, %p83
      %p85 = scmp.ne.s32.totalorder %s74, %s75
      %p86 = scmp.eq.s32.totalorder %s22, 0
      %p87 = por %p85, %p86
      %p88 = scmp.ne.s32.totalorder %s74, %s75
      %p89 = scmp.eq.s32.totalorder %s23, 3
      %p90 = por %p88, %p89
      %p92 = scmp.ne.s32.totalorder %s75, %s91
      %p93 = scmp.eq.s32.totalorder %s23, 0
      %p94 = por %p92, %p93
      %s96 = sadd.s32 %s95, 1
      %p99 = scmp.eq.s32.totalorder %s17, 3
      %p100 = scmp.ne.s32.totalorder %s95, %s97
      %p101 = scmp.eq.s32.totalorder %s17, 0
      %p102 = por %p100, %p101
      %p103 = scmp.ne.s32.totalorder %s95, %s97
      %p104 = scmp.eq.s32.totalorder %s22, 3
      %p105 = por %p103, %p104
      %p106 = scmp.ne.s32.totalorder %s97, %s98
      %p107 = scmp.eq.s32.totalorder %s22, 0
      %p108 = por %p106, %p107
      %p109 = scmp.ne.s32.totalorder %s97, %s98
      %p110 = scmp.eq.s32.totalorder %s23, 3
      %p111 = por %p109, %p110
      %p113 = scmp.ne.s32.totalorder %s98, %s112
      %p114 = scmp.eq.s32.totalorder %s23, 0
      %p115 = por %p113, %p114
      %s116 = ssub.s32 %s24, %s43
      %s117 = ssub.s32 %s25, %s39
      %s118 = sor.u32 %s116, %s117
      %s119 = ssub.s32 %s26, %s35
      %s120 = sor.u32 %s118, %s119
      %p121 = scmp.eq.s32.totalorder %s120, 0
      %s123 = sadd.s32 %s122, 1
      %s124 = scalar_select %p121, %s122, %s123
      %p127 = pneg %p121
      %p128 = scmp.eq.s32.totalorder %s17, 3
      %p129 = por %p127, %p128
      %p130 = scmp.ne.s32.totalorder %s122, %s125
      %p131 = scmp.eq.s32.totalorder %s17, 0
      %p132 = por %p130, %p131
      %p133 = scmp.ne.s32.totalorder %s122, %s125
      %p134 = scmp.eq.s32.totalorder %s22, 3
      %p135 = por %p133, %p134
      %p136 = scmp.ne.s32.totalorder %s125, %s126
      %p137 = scmp.eq.s32.totalorder %s22, 0
      %p138 = por %p136, %p137
      %p139 = scmp.ne.s32.totalorder %s125, %s126
      %p140 = scmp.eq.s32.totalorder %s23, 3
      %p141 = por %p139, %p140
      %p143 = scmp.ne.s32.totalorder %s126, %s142
      %p144 = scmp.eq.s32.totalorder %s23, 0
      %p145 = por %p143, %p144
      %p146 = scmp.le.s32.totalorder 1, %s17
      %p147 = scmp.lt.s32.totalorder %s17, 5
      %p148 = pnand %p146, %p147
      %p149 = pneg %p148
      // Predicated region
      $region9: #{tpu_custom_call.1} parent=5 // pred_check
        _
      $region10: #{tpu_custom_call.1} parent=5 // pred_check_branch
        %151 = sbr.rel (%p148) target = $region12
      $region11: #{tpu_custom_call.1} parent=5 // pred_region
        %s152 = ssub.s32 %s17, 1
        // Predicated region
        $region13: #{tpu_custom_call.1} parent=11 // pred_check
          %p153 = pneg %p57
        $region14: #{tpu_custom_call.1} parent=11 // pred_check_branch
          %155 = sbr.rel (%p153) target = $region16
        $region15: #{tpu_custom_call.1} parent=11 // pred_region
          _
        $region16: #{tpu_custom_call.1} parent=11 // pred_fallthru
          _
        // Predicated region
        $region17: #{tpu_custom_call.1} parent=11 // pred_check
          %p156 = pneg %p108
        $region18: #{tpu_custom_call.1} parent=11 // pred_check_branch
          %158 = sbr.rel (%p156) target = $region20
        $region19: #{tpu_custom_call.1} parent=11 // pred_region
          %s160 = ssub.s32 256, 256
          %161 = vsyncadd [#allocation7], %s160
          %s162 = sshll.u32 [#allocation6], 4
          %s163 = int_to_ptr.vmem [resolvable:$true] %s162
          %168 = dma.hbm_to_vmem [thread:$0]  %s2, 256, %s163, [#allocation7], 64, 64, 4
        $region20: #{tpu_custom_call.1} parent=11 // pred_fallthru
          _
      $region12: #{tpu_custom_call.1} parent=5 // pred_fallthru
        _
      %p169 = scmp.lt.s32.totalorder %s17, 4
      // Predicated region
      $region21: #{tpu_custom_call.1} parent=5 // pred_check
        %p170 = pneg %p169
      $region22: #{tpu_custom_call.1} parent=5 // pred_check_branch
        %172 = sbr.rel (%p170) target = $region24
      $region23: #{tpu_custom_call.1} parent=5 // pred_region
        // Predicated region
        $region25: #{tpu_custom_call.1} parent=23 // pred_check
          %p173 = pneg %p81
        $region26: #{tpu_custom_call.1} parent=23 // pred_check_branch
          %175 = sbr.rel (%p173) target = $region28
        $region27: #{tpu_custom_call.1} parent=23 // pred_region
          %s176 = sand.u32 %s71, 1
          %s177 = scalar_lea.sflag [#allocation4], %s176
          %s178 = sand.u32 %s71, 1
          %s179 = smul.addr %s178, 64
          %s180 = scalar_lea.vmem [#allocation3], %s179
          %s181 = smul.u32 2, %s25
          %s183 = ssub.s32 1024, 1024
          %184 = vsyncadd %s177, %s183
          %s185 = sadd.s32 %s26, %s181
          %s186 = smul.addr %s24, 8
          %s187 = sadd.s32 %s185, %s186
          %s188 = smul.addr %s187, 128
          %s189 = scalar_lea.hbm %s1, %s188
          %s190 = sshll.u32 %s180, 4
          %s191 = int_to_ptr.vmem [resolvable:$true] %s190
          %196 = dma.hbm_to_vmem [thread:$0]  %s189, 1024, %s191, %s177, 128, 128, 8
        $region28: #{tpu_custom_call.1} parent=23 // pred_fallthru
          _
      $region24: #{tpu_custom_call.1} parent=5 // pred_fallthru
        _
      %p197 = scmp.le.s32.totalorder 1, %s17
      %p198 = scmp.lt.s32.totalorder %s17, 5
      %p199 = pnand %p197, %p198
      %p200 = pneg %p199
      // Predicated region
      $region29: #{tpu_custom_call.1} parent=5 // pred_check
        _
      $region30: #{tpu_custom_call.1} parent=5 // pred_check_branch
        %202 = sbr.rel (%p199) target = $region32
      $region31: #{tpu_custom_call.1} parent=5 // pred_region
        %s203 = ssub.s32 %s17, 1
        %s204 = sand.u32 %s74, 1
        %s205 = scalar_lea.sflag [#allocation4], %s204
        %s206 = sand.u32 %s74, 1
        %s207 = smul.addr %s206, 64
        %s208 = scalar_lea.vmem [#allocation3], %s207
        // Predicated region
        $region33: #{tpu_custom_call.1} parent=31 // pred_check
          %p209 = pneg %p87
        $region34: #{tpu_custom_call.1} parent=31 // pred_check_branch
          %211 = sbr.rel (%p209) target = $region36
        $region35: #{tpu_custom_call.1} parent=31 // pred_region
          %212 = dma.done %s205, 1024
        $region36: #{tpu_custom_call.1} parent=31 // pred_fallthru
          _
        // Predicated region
        $region37: #{tpu_custom_call.1} parent=31 // pred_check
          %p213 = pneg %p108
        $region38: #{tpu_custom_call.1} parent=31 // pred_check_branch
          %215 = sbr.rel (%p213) target = $region40
        $region39: #{tpu_custom_call.1} parent=31 // pred_region
          %216 = dma.done [#allocation7], 256
        $region40: #{tpu_custom_call.1} parent=31 // pred_fallthru
          _
        %p217 = pneg %p57
        %p218 = pneg %p54
        %s219 = sand.u32 %s74, 1
        %s220 = scalar_lea.sflag [#allocation4], %s219
        %s221 = sand.u32 %s74, 1
        %s222 = smul.addr %s221, 64
        %s223 = scalar_lea.vmem [#allocation3], %s222
        %p224 = pneg %p87
        %p225 = pneg %p84
        %p226 = pneg %p108
        %p227 = pneg %p105
        %p228 = pneg %p138
        %p229 = pneg %p135
        %s230 = sand.u32 %s125, 1
        %s231 = scalar_lea.sflag [#allocation5], %s230
        %s232 = sand.u32 %s125, 1
        %s233 = smul.addr %s232, 32
        %s234 = scalar_lea.vmem [#allocation8], %s233
        %s235 = smul.u32 2, %s28
        %s236 = smul.u32 4, %s28
        %s238 = sld [smem:[#allocation2]]
        %v239 = vld [vmem:[#allocation6] sm:$0xf]
        %v240 = vld [vmem:[#allocation6 + $0x4] sm:$0xf]
        %v241 = vld [vmem:[#allocation6 + $0x8] sm:$0xf]
        %v242 = vld [vmem:[#allocation6 + $0xc] sm:$0xf]
        %v243 = vld [vmem:[%s208] sm:$0xff]
        %v244 = vld [vmem:[%s208 + $0x8] sm:$0xff]
        %s245 = scalar_lea.vmem %s208, 16 [#allocation3]
        %v246 = vld [vmem:[%s245] sm:$0xff]
        %v247 = vld [vmem:[%s245 + $0x8] sm:$0xff]
        %250 = vrot.lane.b32.xlu0 %v246, 16
        %v251 = vpop.permute.xlu0 %250
        %252 = vrot.lane.b32.xlu0 %v247, 16
        %v253 = vpop.permute.xlu0 %252
        %vm256 = vcmask 130048
        %v257 = vsel %vm256, %v243, %v251
        %v258 = vsel %vm256, %v244, %v253
        %s259 = scalar_lea.vmem %s208, 32 [#allocation3]
        %v260 = vld [vmem:[%s259] sm:$0xff]
        %v261 = vld [vmem:[%s259 + $0x8] sm:$0xff]
        %s262 = scalar_lea.vmem %s208, 48 [#allocation3]
        %v263 = vld [vmem:[%s262] sm:$0xff]
        %v264 = vld [vmem:[%s262 + $0x8] sm:$0xff]
        %267 = vrot.lane.b32.xlu0 %v263, 16
        %v268 = vpop.permute.xlu0 %267
        %269 = vrot.lane.b32.xlu0 %v264, 16
        %v270 = vpop.permute.xlu0 %269
        %v273 = vsel %vm256, %v260, %v268
        %v274 = vsel %vm256, %v261, %v270
        %v275 = vpack.c.bf16 %v258, %v257
        %v276 = vpack.c.bf16 %v274, %v273
        %v277 = vunpack.c.l.bf16 %v275
        %v278 = vunpack.c.h.bf16 %v275
        %v279 = vunpack.c.l.bf16 %v276
        %v280 = vunpack.c.h.bf16 %v276
        %v281 = vsub.f32 %v257, %v277
        %v282 = vsub.f32 %v258, %v278
        %v283 = vsub.f32 %v273, %v279
        %v284 = vsub.f32 %v274, %v280
        %v285 = vpack.c.bf16 %v282, %v281
        %v286 = vpack.c.bf16 %v284, %v283
        %v287 = vunpack.c.l.bf16 %v285
        %v288 = vunpack.c.h.bf16 %v285
        %v289 = vunpack.c.l.bf16 %v286
        %v290 = vunpack.c.h.bf16 %v286
        %v291 = vsub.f32 %v281, %v287
        %v292 = vsub.f32 %v282, %v288
        %v293 = vsub.f32 %v283, %v289
        %v294 = vsub.f32 %v284, %v290
        %v295 = vpack.c.bf16 %v292, %v291
        %v296 = vpack.c.bf16 %v294, %v293
        %v301 = vunpack.c.l.b16 %v239
        %v302 = vunpack.c.l.b16 %v240
        %v303 = vunpack.c.l.b16 %v241
        %v304 = vunpack.c.l.b16 %v242
        %v305 = vpack.c.b16 %v302, %v301
        %v306 = vpack.c.b16 %v304, %v303
        %vm309 = vcmask 261120
        %v311 = vsel %vm309, %v285, 0
        %v314 = vsel %vm309, %v286, 0
        %316 = vmatprep.subr.bf16.mxu0 0
        %317 = vmatpush1.bf16.msra.mxu0 %v305
        %318 = vmatprep.subr.bf16.mxu0 0
        %319 = vmatpush1.bf16.msra.mxu0 %v306
        %320 = vmatprep.subr.bf16.mxu0 0
        %321 = vmatpush1.bf16.msra.mxu0 0
        %322 = vmatprep.subr.bf16.mxu0 0
        %323 = vmatpush1.bf16.msra.mxu0 0
        %324 = vmatprep.subr.bf16.mxu0 0
        %325 = vmatpush1.bf16.msra.mxu0 0
        %326 = vmatprep.subr.bf16.mxu0 0
        %327 = vmatpush1.bf16.msra.mxu0 0
        %328 = vmatprep.subr.bf16.mxu0 0
        %329 = vmatpush1.bf16.msra.mxu0 0
        %330 = vmatprep.subr.bf16.mxu0 0
        %331 = vmatpush1.bf16.msra.mxu0 0
        %332 = vmatprep.subr.bf16.mxu0 0
        %333 = vmatpush1.bf16.msra.mxu0 0
        %334 = vmatprep.subr.bf16.mxu0 0
        %335 = vmatpush1.bf16.msra.mxu0 0
        %336 = vmatprep.subr.bf16.mxu0 0
        %337 = vmatpush1.bf16.msra.mxu0 0
        %338 = vmatprep.subr.bf16.mxu0 0
        %339 = vmatpush1.bf16.msra.mxu0 0
        %340 = vmatprep.subr.bf16.mxu0 0
        %341 = vmatpush1.bf16.msra.mxu0 0
        %342 = vmatprep.subr.bf16.mxu0 0
        %343 = vmatpush1.bf16.msra.mxu0 0
        %344 = vmatprep.subr.bf16.mxu0 0
        %345 = vmatpush1.bf16.msra.mxu0 0
        %346 = vmatprep.subr.bf16.mxu0 0
        %347 = vmatpush1.bf16.msra.mxu0 0
        %348 = vmatprep.mubr.bf16.mxu0 0
        %349 = vmatmul.mubr.bf16.gmra.mrb[0].mxu0 %v311
        %v350 = vpop.f32.mrb[0].mxu0
        %v351 = vadd.f32 0.0, %v350
        %v352 = vpop.f32.mrb[0].mxu0
        %v353 = vpop.f32.mrb[0].mxu0
        %v354 = vadd.f32 0.0, %v353
        %v355 = vpop.f32.mrb[0].mxu0
        %356 = vmatprep.mubr.bf16.mxu0 0
        %357 = vmatmul.mubr.bf16.gmra.mrb[0].mxu0 %v314
        %v358 = vpop.f32.mrb[0].mxu0
        %v359 = vadd.f32 0.0, %v358
        %v360 = vpop.f32.mrb[0].mxu0
        %v361 = vpop.f32.mrb[0].mxu0
        %v362 = vadd.f32 0.0, %v361
        %v363 = vpop.f32.mrb[0].mxu0
        %364 = vdwg.mxu0
        %v366 = vsel %vm309, %v275, 0
        %v369 = vsel %vm309, %v276, 0
        %371 = vmatprep.subr.bf16.mxu0 0
        %372 = vmatpush1.bf16.msra.mxu0 %v305
        %373 = vmatprep.subr.bf16.mxu0 0
        %374 = vmatpush1.bf16.msra.mxu0 %v306
        %375 = vmatprep.subr.bf16.mxu0 0
        %376 = vmatpush1.bf16.msra.mxu0 0
        %377 = vmatprep.subr.bf16.mxu0 0
        %378 = vmatpush1.bf16.msra.mxu0 0
        %379 = vmatprep.subr.bf16.mxu0 0
        %380 = vmatpush1.bf16.msra.mxu0 0
        %381 = vmatprep.subr.bf16.mxu0 0
        %382 = vmatpush1.bf16.msra.mxu0 0
        %383 = vmatprep.subr.bf16.mxu0 0
        %384 = vmatpush1.bf16.msra.mxu0 0
        %385 = vmatprep.subr.bf16.mxu0 0
        %386 = vmatpush1.bf16.msra.mxu0 0
        %387 = vmatprep.subr.bf16.mxu0 0
        %388 = vmatpush1.bf16.msra.mxu0 0
        %389 = vmatprep.subr.bf16.mxu0 0
        %390 = vmatpush1.bf16.msra.mxu0 0
        %391 = vmatprep.subr.bf16.mxu0 0
        %392 = vmatpush1.bf16.msra.mxu0 0
        %393 = vmatprep.subr.bf16.mxu0 0
        %394 = vmatpush1.bf16.msra.mxu0 0
        %395 = vmatprep.subr.bf16.mxu0 0
        %396 = vmatpush1.bf16.msra.mxu0 0
        %397 = vmatprep.subr.bf16.mxu0 0
        %398 = vmatpush1.bf16.msra.mxu0 0
        %399 = vmatprep.subr.bf16.mxu0 0
        %400 = vmatpush1.bf16.msra.mxu0 0
        %401 = vmatprep.subr.bf16.mxu0 0
        %402 = vmatpush1.bf16.msra.mxu0 0
        %403 = vmatprep.mubr.bf16.mxu0 0
        %404 = vmatmul.mubr.bf16.gmra.mrb[0].mxu0 %v366
        %v405 = vpop.f32.mrb[0].mxu0
        %v406 = vadd.f32 %v351, %v405
        %v407 = vpop.f32.mrb[0].mxu0
        %v408 = vpop.f32.mrb[0].mxu0
        %v409 = vadd.f32 %v354, %v408
        %v410 = vpop.f32.mrb[0].mxu0
        %411 = vmatprep.mubr.bf16.mxu0 0
        %412 = vmatmul.mubr.bf16.gmra.mrb[0].mxu0 %v369
        %v413 = vpop.f32.mrb[0].mxu0
        %v414 = vadd.f32 %v359, %v413
        %v415 = vpop.f32.mrb[0].mxu0
        %v416 = vpop.f32.mrb[0].mxu0
        %v417 = vadd.f32 %v362, %v416
        %v418 = vpop.f32.mrb[0].mxu0
        %419 = vdwg.mxu0
        %v421 = vsel %vm309, %v295, 0
        %v424 = vsel %vm309, %v296, 0
        %426 = vmatprep.subr.bf16.mxu0 0
        %427 = vmatpush1.bf16.msra.mxu0 %v305
        %428 = vmatprep.subr.bf16.mxu0 0
        %429 = vmatpush1.bf16.msra.mxu0 %v306
        %430 = vmatprep.subr.bf16.mxu0 0
        %431 = vmatpush1.bf16.msra.mxu0 0
        %432 = vmatprep.subr.bf16.mxu0 0
        %433 = vmatpush1.bf16.msra.mxu0 0
        %434 = vmatprep.subr.bf16.mxu0 0
        %435 = vmatpush1.bf16.msra.mxu0 0
        %436 = vmatprep.subr.bf16.mxu0 0
        %437 = vmatpush1.bf16.msra.mxu0 0
        %438 = vmatprep.subr.bf16.mxu0 0
        %439 = vmatpush1.bf16.msra.mxu0 0
        %440 = vmatprep.subr.bf16.mxu0 0
        %441 = vmatpush1.bf16.msra.mxu0 0
        %442 = vmatprep.subr.bf16.mxu0 0
        %443 = vmatpush1.bf16.msra.mxu0 0
        %444 = vmatprep.subr.bf16.mxu0 0
        %445 = vmatpush1.bf16.msra.mxu0 0
        %446 = vmatprep.subr.bf16.mxu0 0
        %447 = vmatpush1.bf16.msra.mxu0 0
        %448 = vmatprep.subr.bf16.mxu0 0
        %449 = vmatpush1.bf16.msra.mxu0 0
        %450 = vmatprep.subr.bf16.mxu0 0
        %451 = vmatpush1.bf16.msra.mxu0 0
        %452 = vmatprep.subr.bf16.mxu0 0
        %453 = vmatpush1.bf16.msra.mxu0 0
        %454 = vmatprep.subr.bf16.mxu0 0
        %455 = vmatpush1.bf16.msra.mxu0 0
        %456 = vmatprep.subr.bf16.mxu0 0
        %457 = vmatpush1.bf16.msra.mxu0 0
        %458 = vmatprep.mubr.bf16.mxu0 0
        %459 = vmatmul.mubr.bf16.gmra.mrb[0].mxu0 %v421
        %v460 = vpop.f32.mrb[0].mxu0
        %v461 = vadd.f32 0.0, %v460
        %v462 = vpop.f32.mrb[0].mxu0
        %v463 = vpop.f32.mrb[0].mxu0
        %v464 = vadd.f32 0.0, %v463
        %v465 = vpop.f32.mrb[0].mxu0
        %466 = vmatprep.mubr.bf16.mxu0 0
        %467 = vmatmul.mubr.bf16.gmra.mrb[0].mxu0 %v424
        %v468 = vpop.f32.mrb[0].mxu0
        %v469 = vadd.f32 0.0, %v468
        %v470 = vpop.f32.mrb[0].mxu0
        %v471 = vpop.f32.mrb[0].mxu0
        %v472 = vadd.f32 0.0, %v471
        %v473 = vpop.f32.mrb[0].mxu0
        %474 = vdwg.mxu0
        %v475 = vadd.f32 %v406, %v461
        %v476 = vadd.f32 %v409, %v464
        %v477 = vadd.f32 %v414, %v469
        %v478 = vadd.f32 %v417, %v472
        %v481 = vcombine.high %v475, %v475
        %v483 = vunpack.c.l.s4 1966171168
        %v484 = vunpack.c.0.s8 %v483
        %v485 = vlaneseq
        %v486 = vshrl.u32 %v485, 7
        %v487 = vsub.s32 %v484, %v486
        %v488 = vrot.slane %v475, %v487
        %v490 = vunpack.c.l.s4 1966171168
        %v491 = vunpack.c.0.s8 %v490
        %v492 = vlaneseq
        %v493 = vshrl.u32 %v492, 7
        %v494 = vsub.s32 %v491, %v493
        %v495 = vrot.slane %v481, %v494
        %v496 = vcombine.high %v488, %v488
        %v497 = vcombine.high %v495, %v495
        %v499 = vunpack.c.l.s4 1966171168
        %v500 = vunpack.c.0.s8 %v499
        %v501 = vlaneseq
        %v502 = vshrl.u32 %v501, 7
        %v503 = vsub.s32 %v500, %v502
        %v504 = vrot.slane %v488, %v503
        %v506 = vunpack.c.l.s4 1966171168
        %v507 = vunpack.c.0.s8 %v506
        %v508 = vlaneseq
        %v509 = vshrl.u32 %v508, 7
        %v510 = vsub.s32 %v507, %v509
        %v511 = vrot.slane %v495, %v510
        %v513 = vunpack.c.l.s4 1966171168
        %v514 = vunpack.c.0.s8 %v513
        %v515 = vlaneseq
        %v516 = vshrl.u32 %v515, 7
        %v517 = vsub.s32 %v514, %v516
        %v518 = vrot.slane %v496, %v517
        %v520 = vunpack.c.l.s4 1966171168
        %v521 = vunpack.c.0.s8 %v520
        %v522 = vlaneseq
        %v523 = vshrl.u32 %v522, 7
        %v524 = vsub.s32 %v521, %v523
        %v525 = vrot.slane %v497, %v524
        %v526 = vcombine.high %v504, %v504
        %v527 = vcombine.high %v511, %v511
        %v528 = vcombine.high %v518, %v518
        %v529 = vcombine.high %v525, %v525
        %v530 = vcombine.high %v476, %v476
        %v532 = vunpack.c.l.s4 1966171168
        %v533 = vunpack.c.0.s8 %v532
        %v534 = vlaneseq
        %v535 = vshrl.u32 %v534, 7
        %v536 = vsub.s32 %v533, %v535
        %v537 = vrot.slane %v476, %v536
        %v539 = vunpack.c.l.s4 1966171168
        %v540 = vunpack.c.0.s8 %v539
        %v541 = vlaneseq
        %v542 = vshrl.u32 %v541, 7
        %v543 = vsub.s32 %v540, %v542
        %v544 = vrot.slane %v530, %v543
        %v545 = vcombine.high %v537, %v537
        %v546 = vcombine.high %v544, %v544
        %v548 = vunpack.c.l.s4 1966171168
        %v549 = vunpack.c.0.s8 %v548
        %v550 = vlaneseq
        %v551 = vshrl.u32 %v550, 7
        %v552 = vsub.s32 %v549, %v551
        %v553 = vrot.slane %v537, %v552
        %v555 = vunpack.c.l.s4 1966171168
        %v556 = vunpack.c.0.s8 %v555
        %v557 = vlaneseq
        %v558 = vshrl.u32 %v557, 7
        %v559 = vsub.s32 %v556, %v558
        %v560 = vrot.slane %v544, %v559
        %v562 = vunpack.c.l.s4 1966171168
        %v563 = vunpack.c.0.s8 %v562
        %v564 = vlaneseq
        %v565 = vshrl.u32 %v564, 7
        %v566 = vsub.s32 %v563, %v565
        %v567 = vrot.slane %v545, %v566
        %v569 = vunpack.c.l.s4 1966171168
        %v570 = vunpack.c.0.s8 %v569
        %v571 = vlaneseq
        %v572 = vshrl.u32 %v571, 7
        %v573 = vsub.s32 %v570, %v572
        %v574 = vrot.slane %v546, %v573
        %v575 = vcombine.high %v553, %v553
        %v576 = vcombine.high %v560, %v560
        %v577 = vcombine.high %v567, %v567
        %v578 = vcombine.high %v574, %v574
        %v597 = vcombine.high %v477, %v477
        %v599 = vunpack.c.l.s4 1966171168
        %v600 = vunpack.c.0.s8 %v599
        %v601 = vlaneseq
        %v602 = vshrl.u32 %v601, 7
        %v603 = vsub.s32 %v600, %v602
        %v604 = vrot.slane %v477, %v603
        %v606 = vunpack.c.l.s4 1966171168
        %v607 = vunpack.c.0.s8 %v606
        %v608 = vlaneseq
        %v609 = vshrl.u32 %v608, 7
        %v610 = vsub.s32 %v607, %v609
        %v611 = vrot.slane %v597, %v610
        %v612 = vcombine.high %v604, %v604
        %v613 = vcombine.high %v611, %v611
        %v615 = vunpack.c.l.s4 1966171168
        %v616 = vunpack.c.0.s8 %v615
        %v617 = vlaneseq
        %v618 = vshrl.u32 %v617, 7
        %v619 = vsub.s32 %v616, %v618
        %v620 = vrot.slane %v604, %v619
        %v622 = vunpack.c.l.s4 1966171168
        %v623 = vunpack.c.0.s8 %v622
        %v624 = vlaneseq
        %v625 = vshrl.u32 %v624, 7
        %v626 = vsub.s32 %v623, %v625
        %v627 = vrot.slane %v611, %v626
        %v629 = vunpack.c.l.s4 1966171168
        %v630 = vunpack.c.0.s8 %v629
        %v631 = vlaneseq
        %v632 = vshrl.u32 %v631, 7
        %v633 = vsub.s32 %v630, %v632
        %v634 = vrot.slane %v612, %v633
        %v636 = vunpack.c.l.s4 1966171168
        %v637 = vunpack.c.0.s8 %v636
        %v638 = vlaneseq
        %v639 = vshrl.u32 %v638, 7
        %v640 = vsub.s32 %v637, %v639
        %v641 = vrot.slane %v613, %v640
        %v642 = vcombine.high %v620, %v620
        %v643 = vcombine.high %v627, %v627
        %v644 = vcombine.high %v634, %v634
        %v645 = vcombine.high %v641, %v641
        %v646 = vcombine.high %v478, %v478
        %v648 = vunpack.c.l.s4 1966171168
        %v649 = vunpack.c.0.s8 %v648
        %v650 = vlaneseq
        %v651 = vshrl.u32 %v650, 7
        %v652 = vsub.s32 %v649, %v651
        %v653 = vrot.slane %v478, %v652
        %v655 = vunpack.c.l.s4 1966171168
        %v656 = vunpack.c.0.s8 %v655
        %v657 = vlaneseq
        %v658 = vshrl.u32 %v657, 7
        %v659 = vsub.s32 %v656, %v658
        %v660 = vrot.slane %v646, %v659
        %v661 = vcombine.high %v653, %v653
        %v662 = vcombine.high %v660, %v660
        %v664 = vunpack.c.l.s4 1966171168
        %v665 = vunpack.c.0.s8 %v664
        %v666 = vlaneseq
        %v667 = vshrl.u32 %v666, 7
        %v668 = vsub.s32 %v665, %v667
        %v669 = vrot.slane %v653, %v668
        %v671 = vunpack.c.l.s4 1966171168
        %v672 = vunpack.c.0.s8 %v671
        %v673 = vlaneseq
        %v674 = vshrl.u32 %v673, 7
        %v675 = vsub.s32 %v672, %v674
        %v676 = vrot.slane %v660, %v675
        %v678 = vunpack.c.l.s4 1966171168
        %v679 = vunpack.c.0.s8 %v678
        %v680 = vlaneseq
        %v681 = vshrl.u32 %v680, 7
        %v682 = vsub.s32 %v679, %v681
        %v683 = vrot.slane %v661, %v682
        %v685 = vunpack.c.l.s4 1966171168
        %v686 = vunpack.c.0.s8 %v685
        %v687 = vlaneseq
        %v688 = vshrl.u32 %v687, 7
        %v689 = vsub.s32 %v686, %v688
        %v690 = vrot.slane %v662, %v689
        %v691 = vcombine.high %v669, %v669
        %v692 = vcombine.high %v676, %v676
        %v693 = vcombine.high %v683, %v683
        %v694 = vcombine.high %v690, %v690
        %v695 = vlaneseq
        %v696 = vshrl.u32 %v695, 7
        %v697 = vsub.s32 0, %v696
        %v698 = vrot.slane %v620, %v697
        %v699 = vlaneseq
        %v700 = vshrl.u32 %v699, 7
        %v701 = vsub.s32 0, %v700
        %v702 = vrot.slane %v634, %v701
        %v703 = vlaneseq
        %v704 = vshrl.u32 %v703, 7
        %v705 = vsub.s32 0, %v704
        %v706 = vrot.slane %v642, %v705
        %v707 = vlaneseq
        %v708 = vshrl.u32 %v707, 7
        %v709 = vsub.s32 0, %v708
        %v710 = vrot.slane %v644, %v709
        %v711 = vlaneseq
        %v712 = vshrl.u32 %v711, 7
        %v713 = vsub.s32 0, %v712
        %v714 = vrot.slane %v627, %v713
        %v715 = vlaneseq
        %v716 = vshrl.u32 %v715, 7
        %v717 = vsub.s32 0, %v716
        %v718 = vrot.slane %v641, %v717
        %v719 = vlaneseq
        %v720 = vshrl.u32 %v719, 7
        %v721 = vsub.s32 0, %v720
        %v722 = vrot.slane %v643, %v721
        %v723 = vlaneseq
        %v724 = vshrl.u32 %v723, 7
        %v725 = vsub.s32 0, %v724
        %v726 = vrot.slane %v645, %v725
        %v727 = vlaneseq
        %v728 = vshrl.u32 %v727, 7
        %v729 = vsub.s32 0, %v728
        %v730 = vrot.slane %v669, %v729
        %v731 = vlaneseq
        %v732 = vshrl.u32 %v731, 7
        %v733 = vsub.s32 0, %v732
        %v734 = vrot.slane %v683, %v733
        %v735 = vlaneseq
        %v736 = vshrl.u32 %v735, 7
        %v737 = vsub.s32 0, %v736
        %v738 = vrot.slane %v691, %v737
        %v739 = vlaneseq
        %v740 = vshrl.u32 %v739, 7
        %v741 = vsub.s32 0, %v740
        %v742 = vrot.slane %v693, %v741
        %v743 = vlaneseq
        %v744 = vshrl.u32 %v743, 7
        %v745 = vsub.s32 0, %v744
        %v746 = vrot.slane %v676, %v745
        %v747 = vlaneseq
        %v748 = vshrl.u32 %v747, 7
        %v749 = vsub.s32 0, %v748
        %v750 = vrot.slane %v690, %v749
        %v751 = vlaneseq
        %v752 = vshrl.u32 %v751, 7
        %v753 = vsub.s32 0, %v752
        %v754 = vrot.slane %v692, %v753
        %v755 = vlaneseq
        %v756 = vshrl.u32 %v755, 7
        %v757 = vsub.s32 0, %v756
        %v758 = vrot.slane %v694, %v757
        %vm775 = vcmask 1040384
        %v776 = vsel %vm775, %v504, %v698
        %v777 = vsel %vm775, %v518, %v702
        %v778 = vsel %vm775, %v526, %v706
        %v779 = vsel %vm775, %v528, %v710
        %v780 = vsel %vm775, %v511, %v714
        %v781 = vsel %vm775, %v525, %v718
        %v782 = vsel %vm775, %v527, %v722
        %v783 = vsel %vm775, %v529, %v726
        %v784 = vsel %vm775, %v553, %v730
        %v785 = vsel %vm775, %v567, %v734
        %v786 = vsel %vm775, %v575, %v738
        %v787 = vsel %vm775, %v577, %v742
        %v788 = vsel %vm775, %v560, %v746
        %v789 = vsel %vm775, %v574, %v750
        %v790 = vsel %vm775, %v576, %v754
        %v791 = vsel %vm775, %v578, %v758
        %vm792 = vcmp.gt.f32.partialorder %v776, 0.0
        %vm793 = vcmp.gt.f32.partialorder %v777, 0.0
        %vm794 = vcmp.gt.f32.partialorder %v778, 0.0
        %vm795 = vcmp.gt.f32.partialorder %v779, 0.0
        %vm796 = vcmp.gt.f32.partialorder %v780, 0.0
        %vm797 = vcmp.gt.f32.partialorder %v781, 0.0
        %vm798 = vcmp.gt.f32.partialorder %v782, 0.0
        %vm799 = vcmp.gt.f32.partialorder %v783, 0.0
        %vm800 = vcmp.gt.f32.partialorder %v784, 0.0
        %vm801 = vcmp.gt.f32.partialorder %v785, 0.0
        %vm802 = vcmp.gt.f32.partialorder %v786, 0.0
        %vm803 = vcmp.gt.f32.partialorder %v787, 0.0
        %vm804 = vcmp.gt.f32.partialorder %v788, 0.0
        %vm805 = vcmp.gt.f32.partialorder %v789, 0.0
        %vm806 = vcmp.gt.f32.partialorder %v790, 0.0
        %vm807 = vcmp.gt.f32.partialorder %v791, 0.0
        %v808 = vstv %s238
        %v809 = vmul.f32 %v808, %v776
        %v810 = vmul.f32 %v808, %v777
        %v811 = vmul.f32 %v808, %v778
        %v812 = vmul.f32 %v808, %v779
        %v813 = vmul.f32 %v808, %v780
        %v814 = vmul.f32 %v808, %v781
        %v815 = vmul.f32 %v808, %v782
        %v816 = vmul.f32 %v808, %v783
        %v817 = vmul.f32 %v808, %v784
        %v818 = vmul.f32 %v808, %v785
        %v819 = vmul.f32 %v808, %v786
        %v820 = vmul.f32 %v808, %v787
        %v821 = vmul.f32 %v808, %v788
        %v822 = vmul.f32 %v808, %v789
        %v823 = vmul.f32 %v808, %v790
        %v824 = vmul.f32 %v808, %v791
        %v825 = vsel %vm792, %v776, %v809
        %v826 = vsel %vm793, %v777, %v810
        %v827 = vsel %vm794, %v778, %v811
        %v828 = vsel %vm795, %v779, %v812
        %v829 = vsel %vm796, %v780, %v813
        %v830 = vsel %vm797, %v781, %v814
        %v831 = vsel %vm798, %v782, %v815
        %v832 = vsel %vm799, %v783, %v816
        %v833 = vsel %vm800, %v784, %v817
        %v834 = vsel %vm801, %v785, %v818
        %v835 = vsel %vm802, %v786, %v819
        %v836 = vsel %vm803, %v787, %v820
        %v837 = vsel %vm804, %v788, %v821
        %v838 = vsel %vm805, %v789, %v822
        %v839 = vsel %vm806, %v790, %v823
        %v840 = vsel %vm807, %v791, %v824
        %v857 = vcombine.low %v825, %v826
        %v858 = vcombine.low %v827, %v828
        %v860 = vunpack.c.l.s4 1983009808
        %v861 = vunpack.c.0.s8 %v860
        %v862 = vlaneseq
        %v863 = vshrl.u32 %v862, 7
        %v864 = vsub.s32 %v861, %v863
        %v865 = vrot.slane %v857, %v864
        %v867 = vunpack.c.l.s4 1983009808
        %v868 = vunpack.c.0.s8 %v867
        %v869 = vlaneseq
        %v870 = vshrl.u32 %v869, 7
        %v871 = vsub.s32 %v868, %v870
        %v872 = vrot.slane %v858, %v871
        %v873 = vcombine.low %v865, %v872
        %v874 = vcombine.low %v829, %v830
        %v875 = vcombine.low %v831, %v832
        %v877 = vunpack.c.l.s4 1983009808
        %v878 = vunpack.c.0.s8 %v877
        %v879 = vlaneseq
        %v880 = vshrl.u32 %v879, 7
        %v881 = vsub.s32 %v878, %v880
        %v882 = vrot.slane %v874, %v881
        %v884 = vunpack.c.l.s4 1983009808
        %v885 = vunpack.c.0.s8 %v884
        %v886 = vlaneseq
        %v887 = vshrl.u32 %v886, 7
        %v888 = vsub.s32 %v885, %v887
        %v889 = vrot.slane %v875, %v888
        %v890 = vcombine.low %v882, %v889
        %v891 = vcombine.low %v833, %v834
        %v892 = vcombine.low %v835, %v836
        %v894 = vunpack.c.l.s4 1983009808
        %v895 = vunpack.c.0.s8 %v894
        %v896 = vlaneseq
        %v897 = vshrl.u32 %v896, 7
        %v898 = vsub.s32 %v895, %v897
        %v899 = vrot.slane %v891, %v898
        %v901 = vunpack.c.l.s4 1983009808
        %v902 = vunpack.c.0.s8 %v901
        %v903 = vlaneseq
        %v904 = vshrl.u32 %v903, 7
        %v905 = vsub.s32 %v902, %v904
        %v906 = vrot.slane %v892, %v905
        %v907 = vcombine.low %v899, %v906
        %v908 = vcombine.low %v837, %v838
        %v909 = vcombine.low %v839, %v840
        %v911 = vunpack.c.l.s4 1983009808
        %v912 = vunpack.c.0.s8 %v911
        %v913 = vlaneseq
        %v914 = vshrl.u32 %v913, 7
        %v915 = vsub.s32 %v912, %v914
        %v916 = vrot.slane %v908, %v915
        %v918 = vunpack.c.l.s4 1983009808
        %v919 = vunpack.c.0.s8 %v918
        %v920 = vlaneseq
        %v921 = vshrl.u32 %v920, 7
        %v922 = vsub.s32 %v919, %v921
        %v923 = vrot.slane %v909, %v922
        %v924 = vcombine.low %v916, %v923
        %929 = vst.msk [vmem:[%s234] sm:$0xff] %vm309, %v873
        %930 = vst.msk [vmem:[%s234 + $0x8] sm:$0xff] %vm309, %v890
        %931 = vst.msk [vmem:[%s234 + $0x10] sm:$0xff] %vm309, %v907
        %932 = vst.msk [vmem:[%s234 + $0x18] sm:$0xff] %vm309, %v924
        %s933 = sand.u32 %s125, 1
        %s934 = scalar_lea.sflag [#allocation5], %s933
        %s935 = sand.u32 %s125, 1
        %s936 = smul.addr %s935, 32
        %s937 = scalar_lea.vmem [#allocation8], %s936
        // Predicated region
        $region41: #{tpu_custom_call.1} parent=31 // pred_check
          %p938 = pneg %p135
        $region42: #{tpu_custom_call.1} parent=31 // pred_check_branch
          %940 = sbr.rel (%p938) target = $region44
        $region43: #{tpu_custom_call.1} parent=31 // pred_region
          %s941 = smul.u32 4, %s28
          %s943 = ssub.s32 512, 512
          %944 = vsyncadd %s934, %s943
          %s945 = sadd.s32 %s29, %s941
          %s946 = smul.addr %s27, 4
          %s947 = sadd.s32 %s945, %s946
          %s948 = smul.addr %s947, 128
          %s949 = scalar_lea.hbm %s3, %s948
          %s950 = sshll.u32 %s937, 4
          %s951 = int_to_ptr.vmem [resolvable:$true] %s950
          %956 = dma.vmem_to_hbm [thread:$0]  %s951, 512, %s949, %s934, 128, 128, 8
        $region44: #{tpu_custom_call.1} parent=31 // pred_fallthru
          _
      $region32: #{tpu_custom_call.1} parent=5 // pred_fallthru
        _
      %p957 = scmp.le.s32.totalorder 2, %s17
      // Predicated region
      $region45: #{tpu_custom_call.1} parent=5 // pred_check
        %p958 = pneg %p957
      $region46: #{tpu_custom_call.1} parent=5 // pred_check_branch
        %960 = sbr.rel (%p958) target = $region48
      $region47: #{tpu_custom_call.1} parent=5 // pred_region
        %s961 = ssub.s32 %s17, 2
        // Predicated region
        $region49: #{tpu_custom_call.1} parent=47 // pred_check
          %p962 = pneg %p141
        $region50: #{tpu_custom_call.1} parent=47 // pred_check_branch
          %964 = sbr.rel (%p962) target = $region52
        $region51: #{tpu_custom_call.1} parent=47 // pred_region
          %s965 = sand.u32 %s126, 1
          %s966 = scalar_lea.sflag [#allocation5], %s965
          %s967 = sand.u32 %s126, 1
          %s968 = smul.addr %s967, 32
          %s969 = scalar_lea.vmem [#allocation8], %s968
          %970 = dma.done %s966, 512
        $region52: #{tpu_custom_call.1} parent=47 // pred_fallthru
          _
      $region48: #{tpu_custom_call.1} parent=5 // pred_fallthru
        _
    $region6: #{tpu_custom_call.1} parent=1 // loop_footer
      %s21 = sadd.s32 1, %s17
    $region7: #{tpu_custom_call.1} parent=1 // loop_footer_branch
      %16 = sbr.rel target = $region3
    $region8: #{tpu_custom_call.1} parent=1 // loop_exit
      _
    %971 = vsyncpa [#allocation4], 1
    %s972 = scalar_lea.sflag [#allocation4], 1
    %973 = vsyncpa %s972, 1
    %974 = vsyncpa [#allocation7], 1
    %975 = vsyncpa [#allocation5], 1
    %s976 = scalar_lea.sflag [#allocation5], 1
    %977 = vsyncpa %s976, 1

</llo_original>
